<compile_context>
chip_gen: v5e
topology: v5e:2x2
jax: 0.10.0
libtpu: 0.0.40
codegen_flags: <defaults>
</compile_context>

<pallas_src>
import jax
import jax.numpy as jnp
from jax.experimental import pallas as pl
from jax.experimental.pallas import tpu as pltpu


def nn_func_polar_kernel(x_ref, w1_ref, b1_ref, w2_ref, b2_ref,
                         wdir_ref, bdir_ref, wmag_ref, bmag_ref,
                         out_ref):
    # x tile: (TB, input_dim) f32.  Input normalization is already folded into
    # w1/b1, so x feeds the first matmul directly.
    x = x_ref[...]

    # ---- net(x): 2 hidden tanh layers, bf16 MXU operands, f32 accumulate ----
    h1 = jnp.tanh(jnp.dot(x.astype(jnp.bfloat16), w1_ref[...],
                          preferred_element_type=jnp.float32) + b1_ref[...])
    h2 = jnp.tanh(jnp.dot(h1.astype(jnp.bfloat16), w2_ref[...],
                          preferred_element_type=jnp.float32) + b2_ref[...])

    # direction head on the MXU: (TB, grad_dim)
    out_dir = jnp.dot(h2.astype(jnp.bfloat16), wdir_ref[...],
                      preferred_element_type=jnp.float32) + bdir_ref[...]

    # magnitude head on the VPU/XLU (N=1 matmul would waste a full MXU pass);
    # lm_mean / lm_std are already folded into wmag_row / bmag.
    log_mag = jnp.sum(h2 * wmag_ref[...], axis=-1, keepdims=True) + bmag_ref[...]  # (TB, 1)

    # ---- polar recombination: out_dir / ||out_dir||_1 * exp(log_mag) -------
    dir_norms = jnp.sum(jnp.abs(out_dir), axis=-1, keepdims=True)                  # (TB, 1)
    scale = jnp.exp(log_mag) * pl.reciprocal(dir_norms, approx=True)               # EUP
    out_ref[...] = out_dir * scale


def nn_func_polar(x, params, *, tb=512):
    """x: (B, input_dim) f32. params: output of fold_params(). Returns (B, grad_dim) f32."""
    B, input_dim = x.shape
    hidden = params["w2"].shape[0]
    grad_dim = params["wdir"].shape[1]

    # Batch tile: pick the largest tile <= tb; pad B up to a tile multiple so
    # every block is full (padded rows are sliced off at the end).
    tb = min(tb, B)
    n_blocks = pl.cdiv(B, tb)
    bp = n_blocks * tb
    if bp != B:
        x = jnp.pad(x, ((0, bp - B), (0, 0)))

    def const(shape):
        # Weights / biases: constant index_map -> stay VMEM-resident across steps.
        return pl.BlockSpec(shape, lambda i: (0, 0))

    out = pl.pallas_call(
        nn_func_polar_kernel,
        out_shape=jax.ShapeDtypeStruct((bp, grad_dim), jnp.float32),
        grid_spec=pltpu.PrefetchScalarGridSpec(
            num_scalar_prefetch=0,
            grid=(n_blocks,),
            in_specs=[
                pl.BlockSpec((tb, input_dim), lambda i: (i, 0)),   # x: batch-tiled
                const((input_dim, hidden)),                        # w1 (bf16, norm folded)
                const((1, hidden)),                                # b1
                const((hidden, hidden)),                           # w2 (bf16)
                const((1, hidden)),                                # b2
                const((hidden, grad_dim)),                         # wdir (bf16)
                const((1, grad_dim)),                              # bdir
                const((1, hidden)),                                # wmag_row (f32, lm_std folded)
                const((1, 1)),                                     # bmag (lm_mean folded)
            ],
            out_specs=pl.BlockSpec((tb, grad_dim), lambda i: (i, 0)),
        ),
        compiler_params=pltpu.CompilerParams(
            dimension_semantics=("parallel",),        # megacore sharding on v7x
            vmem_limit_bytes=32 * 1024 * 1024,
        ),
    )(x, params["w1"], params["b1"], params["w2"], params["b2"],
      params["wdir"], params["bdir"], params["wmag_row"], params["bmag"])

    return out[:B] if bp != B else out


# ----------------------------- parameter prep --------------------------------

def make_raw_params(key, input_dim, hidden, grad_dim):
    """Original-semantics (PyTorch-style) parameters and buffers, all f32."""
    ks = jax.random.split(key, 9)

    def lin(k, fan_in, fan_out):
        return (jax.random.normal(k, (fan_in, fan_out), jnp.float32)
                / jnp.sqrt(jnp.float32(fan_in)))

    return dict(
        # registered buffers of NN_Func_Polar (non-trivial so folding is exercised)
        input_mean=0.1 * jax.random.normal(ks[0], (1, input_dim), jnp.float32),
        input_std=1.0 + 0.2 * jax.random.uniform(ks[1], (1, input_dim), jnp.float32),
        log_mag_mean=jnp.full((1, 1), 0.2, jnp.float32),
        log_mag_std=jnp.full((1, 1), 0.7, jnp.float32),
        # the wrapped net (output dim grad_dim + 1, split into dir / mag heads)
        w1=lin(ks[2], input_dim, hidden),
        b1=0.01 * jax.random.normal(ks[3], (1, hidden), jnp.float32),
        w2=lin(ks[4], hidden, hidden),
        b2=0.01 * jax.random.normal(ks[5], (1, hidden), jnp.float32),
        wdir=lin(ks[6], hidden, grad_dim),
        bdir=0.01 * jax.random.normal(ks[7], (1, grad_dim), jnp.float32),
        wmag=lin(ks[8], hidden, 1),
        bmag=jnp.zeros((1, 1), jnp.float32),
    )


def fold_params(raw):
    """One-time algebraic folding of the normalization buffers into the weights,
    plus bf16 cast of the MXU weights (biases / VPU weights stay f32)."""
    inv_std = 1.0 / raw["input_std"]                                   # (1, D)
    w1f = raw["w1"] * inv_std.T                                        # (D, H) rows scaled
    b1f = raw["b1"] - (raw["input_mean"] * inv_std) @ raw["w1"]        # (1, H)
    wmag_row = (raw["wmag"] * raw["log_mag_std"]).T                    # (1, H)
    bmagf = raw["bmag"] * raw["log_mag_std"] + raw["log_mag_mean"]     # (1, 1)
    return dict(
        w1=w1f.astype(jnp.bfloat16), b1=b1f,
        w2=raw["w2"].astype(jnp.bfloat16), b2=raw["b2"],
        wdir=raw["wdir"].astype(jnp.bfloat16), bdir=raw["bdir"],
        wmag_row=wmag_row, bmag=bmagf,
    )


# ------------------------------- reference -----------------------------------

def reference(x, p):
    """f32 reference with the original (unfolded) PyTorch forward semantics."""
    x_norm = (x - p["input_mean"]) / p["input_std"]
    h1 = jnp.tanh(x_norm @ p["w1"] + p["b1"])
    h2 = jnp.tanh(h1 @ p["w2"] + p["b2"])
    net_out = jnp.concatenate([h2 @ p["wdir"] + p["bdir"],
                               h2 @ p["wmag"] + p["bmag"]], axis=-1)
    grad_dim = p["wdir"].shape[1]
    out_dir = net_out[..., :grad_dim]
    log_mag = p["log_mag_mean"] + net_out[..., grad_dim:] * p["log_mag_std"]
    norms = jnp.sum(jnp.abs(out_dir), axis=-1, keepdims=True)
    return out_dir / norms * jnp.exp(log_mag)


if __name__ == "__main__":
    # hidden / grad_dim chosen as 128 so the MXU tiles and output stores are
    # lane-dense; the kernel itself is general in these dims.
    B, input_dim, hidden, grad_dim = 512, 32, 128, 128

    key = jax.random.PRNGKey(0)
    k_x, k_p = jax.random.split(key)
    x = jax.random.normal(k_x, (B, input_dim), jnp.float32)

    raw = make_raw_params(k_p, input_dim, hidden, grad_dim)
    params = fold_params(raw)

    # tb=128 -> 4-step batch grid at this small demo size (production: tb>=512).
    out = jax.block_until_ready(nn_func_polar(x, params, tb=128))
    ref = reference(x, raw)

    assert out.shape == (B, grad_dim)
    # bf16 MXU operands + EUP approx reciprocal => relaxed tolerance vs f32 ref.
    assert jnp.allclose(out, ref, atol=3e-3, rtol=3e-2), (
        "mismatch vs reference, max abs diff = %e"
        % float(jnp.max(jnp.abs(out - ref))))

    print("KERNEL_OK")
</pallas_src>

<mosaic_0001>
module attributes {stable_mosaic.version = 11 : i64} {
  func.func @nn_func_polar_kernel(%arg0: i32, %arg1: memref<128x32xf32, #tpu.memory_space<vmem>>, %arg2: memref<32x128xbf16, #tpu.memory_space<vmem>>, %arg3: memref<1x128xf32, #tpu.memory_space<vmem>>, %arg4: memref<128x128xbf16, #tpu.memory_space<vmem>>, %arg5: memref<1x128xf32, #tpu.memory_space<vmem>>, %arg6: memref<128x128xbf16, #tpu.memory_space<vmem>>, %arg7: memref<1x128xf32, #tpu.memory_space<vmem>>, %arg8: memref<1x128xf32, #tpu.memory_space<vmem>>, %arg9: memref<1x1xf32, #tpu.memory_space<vmem>>, %arg10: memref<128x128xf32, #tpu.memory_space<vmem>>) attributes {dimension_semantics = [#tpu.dimension_semantics<parallel>], iteration_bounds = array<i64: 4>, scalar_prefetch = 0 : i64, scratch_operands = 0 : i64, tpu.core_type = #tpu.core_type<tc>, window_params = [{transform_indices = @transform_0, window_bounds = array<i64: 128, 32>}, {pipeline_mode = #tpu.pipeline_mode<synchronous>, transform_indices = @transform_1, window_bounds = array<i64: 32, 128>}, {pipeline_mode = #tpu.pipeline_mode<synchronous>, transform_indices = @transform_2, window_bounds = array<i64: 1, 128>}, {pipeline_mode = #tpu.pipeline_mode<synchronous>, transform_indices = @transform_3, window_bounds = array<i64: 128, 128>}, {pipeline_mode = #tpu.pipeline_mode<synchronous>, transform_indices = @transform_4, window_bounds = array<i64: 1, 128>}, {pipeline_mode = #tpu.pipeline_mode<synchronous>, transform_indices = @transform_5, window_bounds = array<i64: 128, 128>}, {pipeline_mode = #tpu.pipeline_mode<synchronous>, transform_indices = @transform_6, window_bounds = array<i64: 1, 128>}, {pipeline_mode = #tpu.pipeline_mode<synchronous>, transform_indices = @transform_7, window_bounds = array<i64: 1, 128>}, {pipeline_mode = #tpu.pipeline_mode<synchronous>, transform_indices = @transform_8, window_bounds = array<i64: 1, 1>}, {transform_indices = @transform_9, window_bounds = array<i64: 128, 128>}]} {
    %c0 = arith.constant 0 : index
    %c0_0 = arith.constant 0 : index
    %0 = vector.load %arg1[%c0, %c0_0] : memref<128x32xf32, #tpu.memory_space<vmem>>, vector<128x32xf32>
    %1 = arith.truncf %0 : vector<128x32xf32> to vector<128x32xbf16>
    %c0_1 = arith.constant 0 : index
    %c0_2 = arith.constant 0 : index
    %2 = vector.load %arg2[%c0_1, %c0_2] : memref<32x128xbf16, #tpu.memory_space<vmem>>, vector<32x128xbf16>
    %cst = arith.constant dense<0.000000e+00> : vector<128x128xf32>
    %3 = tpu.matmul %1, %2, %cst {dimension_numbers = #tpu.dot_dimension_numbers<[1], [0], [0], [1], [0, 0, 1, 1], [], []>} : vector<128x32xbf16>, vector<32x128xbf16>, vector<128x128xf32> -> vector<128x128xf32>
    %c0_3 = arith.constant 0 : index
    %c0_4 = arith.constant 0 : index
    %4 = vector.load %arg3[%c0_3, %c0_4] : memref<1x128xf32, #tpu.memory_space<vmem>>, vector<1x128xf32>
    %5 = vector.broadcast %4 : vector<1x128xf32> to vector<128x128xf32>
    %6 = arith.addf %3, %5 : vector<128x128xf32>
    %7 = math.tanh %6 : vector<128x128xf32>
    %8 = arith.truncf %7 : vector<128x128xf32> to vector<128x128xbf16>
    %c0_5 = arith.constant 0 : index
    %c0_6 = arith.constant 0 : index
    %9 = vector.load %arg4[%c0_5, %c0_6] : memref<128x128xbf16, #tpu.memory_space<vmem>>, vector<128x128xbf16>
    %cst_7 = arith.constant dense<0.000000e+00> : vector<128x128xf32>
    %10 = tpu.matmul %8, %9, %cst_7 {dimension_numbers = #tpu.dot_dimension_numbers<[1], [0], [0], [1], [0, 0, 1, 1], [], []>} : vector<128x128xbf16>, vector<128x128xbf16>, vector<128x128xf32> -> vector<128x128xf32>
    %c0_8 = arith.constant 0 : index
    %c0_9 = arith.constant 0 : index
    %11 = vector.load %arg5[%c0_8, %c0_9] : memref<1x128xf32, #tpu.memory_space<vmem>>, vector<1x128xf32>
    %12 = vector.broadcast %11 : vector<1x128xf32> to vector<128x128xf32>
    %13 = arith.addf %10, %12 : vector<128x128xf32>
    %14 = math.tanh %13 : vector<128x128xf32>
    %15 = arith.truncf %14 : vector<128x128xf32> to vector<128x128xbf16>
    %c0_10 = arith.constant 0 : index
    %c0_11 = arith.constant 0 : index
    %16 = vector.load %arg6[%c0_10, %c0_11] : memref<128x128xbf16, #tpu.memory_space<vmem>>, vector<128x128xbf16>
    %cst_12 = arith.constant dense<0.000000e+00> : vector<128x128xf32>
    %17 = tpu.matmul %15, %16, %cst_12 {dimension_numbers = #tpu.dot_dimension_numbers<[1], [0], [0], [1], [0, 0, 1, 1], [], []>} : vector<128x128xbf16>, vector<128x128xbf16>, vector<128x128xf32> -> vector<128x128xf32>
    %c0_13 = arith.constant 0 : index
    %c0_14 = arith.constant 0 : index
    %18 = vector.load %arg7[%c0_13, %c0_14] : memref<1x128xf32, #tpu.memory_space<vmem>>, vector<1x128xf32>
    %19 = vector.broadcast %18 : vector<1x128xf32> to vector<128x128xf32>
    %20 = arith.addf %17, %19 : vector<128x128xf32>
    %c0_15 = arith.constant 0 : index
    %c0_16 = arith.constant 0 : index
    %21 = vector.load %arg8[%c0_15, %c0_16] : memref<1x128xf32, #tpu.memory_space<vmem>>, vector<1x128xf32>
    %22 = vector.broadcast %21 : vector<1x128xf32> to vector<128x128xf32>
    %23 = arith.mulf %14, %22 : vector<128x128xf32>
    %cst_17 = arith.constant dense<0.000000e+00> : vector<128xf32>
    %24 = vector.multi_reduction <add>, %23, %cst_17 [1] : vector<128x128xf32> to vector<128xf32>
    %25 = vector.shape_cast %24 : vector<128xf32> to vector<128x1xf32>
    %c0_18 = arith.constant 0 : index
    %c0_19 = arith.constant 0 : index
    %26 = vector.load %arg9[%c0_18, %c0_19] : memref<1x1xf32, #tpu.memory_space<vmem>>, vector<1x1xf32>
    %27 = vector.broadcast %26 : vector<1x1xf32> to vector<128x1xf32>
    %28 = arith.addf %25, %27 : vector<128x1xf32>
    %29 = math.absf %20 : vector<128x128xf32>
    %cst_20 = arith.constant dense<0.000000e+00> : vector<128xf32>
    %30 = vector.multi_reduction <add>, %29, %cst_20 [1] : vector<128x128xf32> to vector<128xf32>
    %31 = vector.shape_cast %30 : vector<128xf32> to vector<128x1xf32>
    %32 = math.exp %28 : vector<128x1xf32>
    %33 = tpu.reciprocal %31 {approx = true} : vector<128x1xf32> -> vector<128x1xf32>
    %34 = arith.mulf %32, %33 : vector<128x1xf32>
    %35 = vector.broadcast %34 : vector<128x1xf32> to vector<128x128xf32>
    %36 = arith.mulf %20, %35 : vector<128x128xf32>
    %c0_21 = arith.constant 0 : index
    %c0_22 = arith.constant 0 : index
    %37 = vector.load %arg10[%c0_21, %c0_22] : memref<128x128xf32, #tpu.memory_space<vmem>>, vector<128x128xf32>
    tpu.vector_store %arg10[%c0_21, %c0_22], %36 {strides = array<i32>} : memref<128x128xf32, #tpu.memory_space<vmem>>, vector<128x128xf32>,
    return
  }
  func.func @transform_0(%arg0: i32) -> (i32, i32) {
    %c0_i32 = arith.constant 0 : i32
    %c0_i32_0 = arith.constant 0 : i32
    return %arg0, %c0_i32 : i32, i32
  }
  func.func @transform_1(%arg0: i32) -> (i32, i32) {
    %c0_i32 = arith.constant 0 : i32
    %c0_i32_0 = arith.constant 0 : i32
    %c0_i32_1 = arith.constant 0 : i32
    return %c0_i32, %c0_i32_0 : i32, i32
  }
  func.func @transform_2(%arg0: i32) -> (i32, i32) {
    %c0_i32 = arith.constant 0 : i32
    %c0_i32_0 = arith.constant 0 : i32
    %c0_i32_1 = arith.constant 0 : i32
    return %c0_i32, %c0_i32_0 : i32, i32
  }
  func.func @transform_3(%arg0: i32) -> (i32, i32) {
    %c0_i32 = arith.constant 0 : i32
    %c0_i32_0 = arith.constant 0 : i32
    %c0_i32_1 = arith.constant 0 : i32
    return %c0_i32, %c0_i32_0 : i32, i32
  }
  func.func @transform_4(%arg0: i32) -> (i32, i32) {
    %c0_i32 = arith.constant 0 : i32
    %c0_i32_0 = arith.constant 0 : i32
    %c0_i32_1 = arith.constant 0 : i32
    return %c0_i32, %c0_i32_0 : i32, i32
  }
  func.func @transform_5(%arg0: i32) -> (i32, i32) {
    %c0_i32 = arith.constant 0 : i32
    %c0_i32_0 = arith.constant 0 : i32
    %c0_i32_1 = arith.constant 0 : i32
    return %c0_i32, %c0_i32_0 : i32, i32
  }
  func.func @transform_6(%arg0: i32) -> (i32, i32) {
    %c0_i32 = arith.constant 0 : i32
    %c0_i32_0 = arith.constant 0 : i32
    %c0_i32_1 = arith.constant 0 : i32
    return %c0_i32, %c0_i32_0 : i32, i32
  }
  func.func @transform_7(%arg0: i32) -> (i32, i32) {
    %c0_i32 = arith.constant 0 : i32
    %c0_i32_0 = arith.constant 0 : i32
    %c0_i32_1 = arith.constant 0 : i32
    return %c0_i32, %c0_i32_0 : i32, i32
  }
  func.func @transform_8(%arg0: i32) -> (i32, i32) {
    %c0_i32 = arith.constant 0 : i32
    %c0_i32_0 = arith.constant 0 : i32
    %c0_i32_1 = arith.constant 0 : i32
    return %c0_i32, %c0_i32_0 : i32, i32
  }
  func.func @transform_9(%arg0: i32) -> (i32, i32) {
    %c0_i32 = arith.constant 0 : i32
    %c0_i32_0 = arith.constant 0 : i32
    return %arg0, %c0_i32 : i32, i32
  }
}

</mosaic_0001>

<llo_original>
// kernel: tpu_custom_call.1
$region0: #{tpu_custom_call.1}
  #allocation0 [shape = 'u32[]', space=smem, size = 0x4, offset = 0x4, fixed_abs, tag = 'smem constant byte address 0x4 - core index']
  #allocation1 [shape = 'u32[72,128]{1,0:T(1,128)}', space=vmem, size = 0x9000, scoped, tag = 'internal scratch']
  #allocation2 [shape = 'f32[1,1]{1,0:T(1,128)S(1)}', space=vmem, size = 0x200, scoped, tag = 'scoped memory for tpu_custom_call.1']
  %s0 = inlined_call_operand.vmem [shape: f32[512,32], index: 0, kind: input, shape index: {}]
  %s1 = inlined_call_operand.vmem [shape: bf16[32,128], index: 1, kind: input, shape index: {}]
  %s2 = inlined_call_operand.vmem [shape: f32[1,128], index: 2, kind: input, shape index: {}]
  %s3 = inlined_call_operand.vmem [shape: bf16[128,128], index: 3, kind: input, shape index: {}]
  %s4 = inlined_call_operand.vmem [shape: f32[1,128], index: 4, kind: input, shape index: {}]
  %s5 = inlined_call_operand.vmem [shape: bf16[128,128], index: 5, kind: input, shape index: {}]
  %s6 = inlined_call_operand.vmem [shape: f32[1,128], index: 6, kind: input, shape index: {}]
  %s7 = inlined_call_operand.vmem [shape: f32[1,128], index: 7, kind: input, shape index: {}]
  %s8 = inlined_call_operand.<no memory space> [shape: f32[1,1], index: 8, kind: input, shape index: {}]
  %s9 = inlined_call_operand.hbm [shape: f32[512,128], index: 9, kind: output, shape index: {}]
  %s10 = sld [smem:[#allocation0]]
  $region69: #{tpu_custom_call.1} parent=0
    _
  %s12 = ssub.s32 1, %s10
  %s13 = scalar_select 0, %s12, %s10
  %v14 = vstv %s8
  %15 = vst [vmem:[#allocation2] sm:$0x1] %v14
  $region1: #{tpu_custom_call.1} parent=0
    #allocation3 [shape = 'u8[131072]{0}', space=vmem, size = 0x20000, scoped, tag = 'output window, operand 0']
    #allocation4 [shape = 's32[2]{0}', space=sflag, size = 0x8, scoped, tag = 'scoped memory for tpu_custom_call.1']
    %16 = vsyncpa [#allocation4], 0
    %s17 = scalar_lea.sflag [#allocation4], 1
    %18 = vsyncpa %s17, 0
    loop: start=0, step=1, limit=6
    $region2: #{tpu_custom_call.1} parent=1 // loop_pre_header
      _
    $region3: #{tpu_custom_call.1} parent=1 // loop_header
      %s20 = sphi 0, %s24
      %p21 = scmp.ge.s32.totalorder %s20, 6
      %s30 = sphi 0, %s32
      %s33 = sphi 0, %s30
      %s34 = sphi 0, %s33
      %s50 = sphi 0, %s34
      %s54 = sphi 0, %s54
      %s56 = sphi 0, %s54
      %s57 = sphi 0, %s56
      %s71 = sphi 0, %s57
      %s75 = sphi 0, %s75
      %s77 = sphi 0, %s75
      %s78 = sphi 0, %s77
      %s92 = sphi 0, %s78
      %s96 = sphi 0, %s96
      %s98 = sphi 0, %s96
      %s99 = sphi 0, %s98
      %s113 = sphi 0, %s99
      %s117 = sphi 0, %s117
      %s119 = sphi 0, %s117
      %s120 = sphi 0, %s119
      %s134 = sphi 0, %s120
      %s138 = sphi 0, %s138
      %s140 = sphi 0, %s138
      %s141 = sphi 0, %s140
      %s155 = sphi 0, %s141
      %s159 = sphi 0, %s159
      %s161 = sphi 0, %s159
      %s162 = sphi 0, %s161
      %s176 = sphi 0, %s162
      %s180 = sphi 0, %s180
      %s182 = sphi 0, %s180
      %s183 = sphi 0, %s182
      %s197 = sphi 0, %s183
      %s201 = sphi 0, %s201
      %s203 = sphi 0, %s201
      %s204 = sphi 0, %s203
      %s218 = sphi 0, %s204
      %s224 = sphi 0, %s226
      %s227 = sphi 0, %s224
      %s228 = sphi 0, %s227
      %s244 = sphi 0, %s228
    $region4: #{tpu_custom_call.1} parent=1 // loop_header_branch
      %23 = sbr.rel (%p21) target = $region8
    $region5: #{tpu_custom_call.1} parent=1 // loop_body
      %s25 = ssub.s32 %s20, 1
      %s26 = ssub.s32 %s20, 2
      %s27 = sadd.s32 %s20, 1
      %s28 = ssub.s32 %s20, %s27
      %p29 = scmp.eq.s32.totalorder %s28, 0
      %s31 = sadd.s32 %s30, 1
      %s32 = scalar_select %p29, %s30, %s31
      %p35 = pneg %p29
      %p36 = scmp.eq.s32.totalorder %s20, 3
      %p37 = por %p35, %p36
      %p38 = scmp.ne.s32.totalorder %s30, %s33
      %p39 = scmp.eq.s32.totalorder %s20, 0
      %p40 = por %p38, %p39
      %p41 = scmp.ne.s32.totalorder %s30, %s33
      %p42 = scmp.eq.s32.totalorder %s25, 3
      %p43 = por %p41, %p42
      %p44 = scmp.ne.s32.totalorder %s33, %s34
      %p45 = scmp.eq.s32.totalorder %s25, 0
      %p46 = por %p44, %p45
      %p47 = scmp.ne.s32.totalorder %s33, %s34
      %p48 = scmp.eq.s32.totalorder %s26, 3
      %p49 = por %p47, %p48
      %p51 = scmp.ne.s32.totalorder %s34, %s50
      %p52 = scmp.eq.s32.totalorder %s26, 0
      %p53 = por %p51, %p52
      %s55 = sadd.s32 %s54, 1
      %p58 = scmp.eq.s32.totalorder %s20, 3
      %p59 = scmp.ne.s32.totalorder %s54, %s56
      %p60 = scmp.eq.s32.totalorder %s20, 0
      %p61 = por %p59, %p60
      %p62 = scmp.ne.s32.totalorder %s54, %s56
      %p63 = scmp.eq.s32.totalorder %s25, 3
      %p64 = por %p62, %p63
      %p65 = scmp.ne.s32.totalorder %s56, %s57
      %p66 = scmp.eq.s32.totalorder %s25, 0
      %p67 = por %p65, %p66
      %p68 = scmp.ne.s32.totalorder %s56, %s57
      %p69 = scmp.eq.s32.totalorder %s26, 3
      %p70 = por %p68, %p69
      %p72 = scmp.ne.s32.totalorder %s57, %s71
      %p73 = scmp.eq.s32.totalorder %s26, 0
      %p74 = por %p72, %p73
      %s76 = sadd.s32 %s75, 1
      %p79 = scmp.eq.s32.totalorder %s20, 3
      %p80 = scmp.ne.s32.totalorder %s75, %s77
      %p81 = scmp.eq.s32.totalorder %s20, 0
      %p82 = por %p80, %p81
      %p83 = scmp.ne.s32.totalorder %s75, %s77
      %p84 = scmp.eq.s32.totalorder %s25, 3
      %p85 = por %p83, %p84
      %p86 = scmp.ne.s32.totalorder %s77, %s78
      %p87 = scmp.eq.s32.totalorder %s25, 0
      %p88 = por %p86, %p87
      %p89 = scmp.ne.s32.totalorder %s77, %s78
      %p90 = scmp.eq.s32.totalorder %s26, 3
      %p91 = por %p89, %p90
      %p93 = scmp.ne.s32.totalorder %s78, %s92
      %p94 = scmp.eq.s32.totalorder %s26, 0
      %p95 = por %p93, %p94
      %s97 = sadd.s32 %s96, 1
      %p100 = scmp.eq.s32.totalorder %s20, 3
      %p101 = scmp.ne.s32.totalorder %s96, %s98
      %p102 = scmp.eq.s32.totalorder %s20, 0
      %p103 = por %p101, %p102
      %p104 = scmp.ne.s32.totalorder %s96, %s98
      %p105 = scmp.eq.s32.totalorder %s25, 3
      %p106 = por %p104, %p105
      %p107 = scmp.ne.s32.totalorder %s98, %s99
      %p108 = scmp.eq.s32.totalorder %s25, 0
      %p109 = por %p107, %p108
      %p110 = scmp.ne.s32.totalorder %s98, %s99
      %p111 = scmp.eq.s32.totalorder %s26, 3
      %p112 = por %p110, %p111
      %p114 = scmp.ne.s32.totalorder %s99, %s113
      %p115 = scmp.eq.s32.totalorder %s26, 0
      %p116 = por %p114, %p115
      %s118 = sadd.s32 %s117, 1
      %p121 = scmp.eq.s32.totalorder %s20, 3
      %p122 = scmp.ne.s32.totalorder %s117, %s119
      %p123 = scmp.eq.s32.totalorder %s20, 0
      %p124 = por %p122, %p123
      %p125 = scmp.ne.s32.totalorder %s117, %s119
      %p126 = scmp.eq.s32.totalorder %s25, 3
      %p127 = por %p125, %p126
      %p128 = scmp.ne.s32.totalorder %s119, %s120
      %p129 = scmp.eq.s32.totalorder %s25, 0
      %p130 = por %p128, %p129
      %p131 = scmp.ne.s32.totalorder %s119, %s120
      %p132 = scmp.eq.s32.totalorder %s26, 3
      %p133 = por %p131, %p132
      %p135 = scmp.ne.s32.totalorder %s120, %s134
      %p136 = scmp.eq.s32.totalorder %s26, 0
      %p137 = por %p135, %p136
      %s139 = sadd.s32 %s138, 1
      %p142 = scmp.eq.s32.totalorder %s20, 3
      %p143 = scmp.ne.s32.totalorder %s138, %s140
      %p144 = scmp.eq.s32.totalorder %s20, 0
      %p145 = por %p143, %p144
      %p146 = scmp.ne.s32.totalorder %s138, %s140
      %p147 = scmp.eq.s32.totalorder %s25, 3
      %p148 = por %p146, %p147
      %p149 = scmp.ne.s32.totalorder %s140, %s141
      %p150 = scmp.eq.s32.totalorder %s25, 0
      %p151 = por %p149, %p150
      %p152 = scmp.ne.s32.totalorder %s140, %s141
      %p153 = scmp.eq.s32.totalorder %s26, 3
      %p154 = por %p152, %p153
      %p156 = scmp.ne.s32.totalorder %s141, %s155
      %p157 = scmp.eq.s32.totalorder %s26, 0
      %p158 = por %p156, %p157
      %s160 = sadd.s32 %s159, 1
      %p163 = scmp.eq.s32.totalorder %s20, 3
      %p164 = scmp.ne.s32.totalorder %s159, %s161
      %p165 = scmp.eq.s32.totalorder %s20, 0
      %p166 = por %p164, %p165
      %p167 = scmp.ne.s32.totalorder %s159, %s161
      %p168 = scmp.eq.s32.totalorder %s25, 3
      %p169 = por %p167, %p168
      %p170 = scmp.ne.s32.totalorder %s161, %s162
      %p171 = scmp.eq.s32.totalorder %s25, 0
      %p172 = por %p170, %p171
      %p173 = scmp.ne.s32.totalorder %s161, %s162
      %p174 = scmp.eq.s32.totalorder %s26, 3
      %p175 = por %p173, %p174
      %p177 = scmp.ne.s32.totalorder %s162, %s176
      %p178 = scmp.eq.s32.totalorder %s26, 0
      %p179 = por %p177, %p178
      %s181 = sadd.s32 %s180, 1
      %p184 = scmp.eq.s32.totalorder %s20, 3
      %p185 = scmp.ne.s32.totalorder %s180, %s182
      %p186 = scmp.eq.s32.totalorder %s20, 0
      %p187 = por %p185, %p186
      %p188 = scmp.ne.s32.totalorder %s180, %s182
      %p189 = scmp.eq.s32.totalorder %s25, 3
      %p190 = por %p188, %p189
      %p191 = scmp.ne.s32.totalorder %s182, %s183
      %p192 = scmp.eq.s32.totalorder %s25, 0
      %p193 = por %p191, %p192
      %p194 = scmp.ne.s32.totalorder %s182, %s183
      %p195 = scmp.eq.s32.totalorder %s26, 3
      %p196 = por %p194, %p195
      %p198 = scmp.ne.s32.totalorder %s183, %s197
      %p199 = scmp.eq.s32.totalorder %s26, 0
      %p200 = por %p198, %p199
      %s202 = sadd.s32 %s201, 1
      %p205 = scmp.eq.s32.totalorder %s20, 3
      %p206 = scmp.ne.s32.totalorder %s201, %s203
      %p207 = scmp.eq.s32.totalorder %s20, 0
      %p208 = por %p206, %p207
      %p209 = scmp.ne.s32.totalorder %s201, %s203
      %p210 = scmp.eq.s32.totalorder %s25, 3
      %p211 = por %p209, %p210
      %p212 = scmp.ne.s32.totalorder %s203, %s204
      %p213 = scmp.eq.s32.totalorder %s25, 0
      %p214 = por %p212, %p213
      %p215 = scmp.ne.s32.totalorder %s203, %s204
      %p216 = scmp.eq.s32.totalorder %s26, 3
      %p217 = por %p215, %p216
      %p219 = scmp.ne.s32.totalorder %s204, %s218
      %p220 = scmp.eq.s32.totalorder %s26, 0
      %p221 = por %p219, %p220
      %s222 = ssub.s32 %s20, %s27
      %p223 = scmp.eq.s32.totalorder %s222, 0
      %s225 = sadd.s32 %s224, 1
      %s226 = scalar_select %p223, %s224, %s225
      %p229 = pneg %p223
      %p230 = scmp.eq.s32.totalorder %s20, 3
      %p231 = por %p229, %p230
      %p232 = scmp.ne.s32.totalorder %s224, %s227
      %p233 = scmp.eq.s32.totalorder %s20, 0
      %p234 = por %p232, %p233
      %p235 = scmp.ne.s32.totalorder %s224, %s227
      %p236 = scmp.eq.s32.totalorder %s25, 3
      %p237 = por %p235, %p236
      %p238 = scmp.ne.s32.totalorder %s227, %s228
      %p239 = scmp.eq.s32.totalorder %s25, 0
      %p240 = por %p238, %p239
      %p241 = scmp.ne.s32.totalorder %s227, %s228
      %p242 = scmp.eq.s32.totalorder %s26, 3
      %p243 = por %p241, %p242
      %p245 = scmp.ne.s32.totalorder %s228, %s244
      %p246 = scmp.eq.s32.totalorder %s26, 0
      %p247 = por %p245, %p246
      %p248 = scmp.le.s32.totalorder 1, %s20
      %p249 = scmp.lt.s32.totalorder %s20, 5
      %p250 = pnand %p248, %p249
      %p251 = pneg %p250
      // Predicated region
      $region9: #{tpu_custom_call.1} parent=5 // pred_check
        _
      $region10: #{tpu_custom_call.1} parent=5 // pred_check_branch
        %253 = sbr.rel (%p250) target = $region12
      $region11: #{tpu_custom_call.1} parent=5 // pred_region
        %s254 = ssub.s32 %s20, 1
        // Predicated region
        $region13: #{tpu_custom_call.1} parent=11 // pred_check
          %p255 = pneg %p67
        $region14: #{tpu_custom_call.1} parent=11 // pred_check_branch
          %257 = sbr.rel (%p255) target = $region16
        $region15: #{tpu_custom_call.1} parent=11 // pred_region
          _
        $region16: #{tpu_custom_call.1} parent=11 // pred_fallthru
          _
        // Predicated region
        $region17: #{tpu_custom_call.1} parent=11 // pred_check
          %p258 = pneg %p88
        $region18: #{tpu_custom_call.1} parent=11 // pred_check_branch
          %260 = sbr.rel (%p258) target = $region20
        $region19: #{tpu_custom_call.1} parent=11 // pred_region
          _
        $region20: #{tpu_custom_call.1} parent=11 // pred_fallthru
          _
        // Predicated region
        $region21: #{tpu_custom_call.1} parent=11 // pred_check
          %p261 = pneg %p109
        $region22: #{tpu_custom_call.1} parent=11 // pred_check_branch
          %263 = sbr.rel (%p261) target = $region24
        $region23: #{tpu_custom_call.1} parent=11 // pred_region
          _
        $region24: #{tpu_custom_call.1} parent=11 // pred_fallthru
          _
        // Predicated region
        $region25: #{tpu_custom_call.1} parent=11 // pred_check
          %p264 = pneg %p130
        $region26: #{tpu_custom_call.1} parent=11 // pred_check_branch
          %266 = sbr.rel (%p264) target = $region28
        $region27: #{tpu_custom_call.1} parent=11 // pred_region
          _
        $region28: #{tpu_custom_call.1} parent=11 // pred_fallthru
          _
        // Predicated region
        $region29: #{tpu_custom_call.1} parent=11 // pred_check
          %p267 = pneg %p151
        $region30: #{tpu_custom_call.1} parent=11 // pred_check_branch
          %269 = sbr.rel (%p267) target = $region32
        $region31: #{tpu_custom_call.1} parent=11 // pred_region
          _
        $region32: #{tpu_custom_call.1} parent=11 // pred_fallthru
          _
        // Predicated region
        $region33: #{tpu_custom_call.1} parent=11 // pred_check
          %p270 = pneg %p172
        $region34: #{tpu_custom_call.1} parent=11 // pred_check_branch
          %272 = sbr.rel (%p270) target = $region36
        $region35: #{tpu_custom_call.1} parent=11 // pred_region
          _
        $region36: #{tpu_custom_call.1} parent=11 // pred_fallthru
          _
        // Predicated region
        $region37: #{tpu_custom_call.1} parent=11 // pred_check
          %p273 = pneg %p193
        $region38: #{tpu_custom_call.1} parent=11 // pred_check_branch
          %275 = sbr.rel (%p273) target = $region40
        $region39: #{tpu_custom_call.1} parent=11 // pred_region
          _
        $region40: #{tpu_custom_call.1} parent=11 // pred_fallthru
          _
        // Predicated region
        $region41: #{tpu_custom_call.1} parent=11 // pred_check
          %p276 = pneg %p214
        $region42: #{tpu_custom_call.1} parent=11 // pred_check_branch
          %278 = sbr.rel (%p276) target = $region44
        $region43: #{tpu_custom_call.1} parent=11 // pred_region
          _
        $region44: #{tpu_custom_call.1} parent=11 // pred_fallthru
          _
      $region12: #{tpu_custom_call.1} parent=5 // pred_fallthru
        _
      %p279 = scmp.lt.s32.totalorder %s20, 4
      // Predicated region
      $region45: #{tpu_custom_call.1} parent=5 // pred_check
        %p280 = pneg %p279
      $region46: #{tpu_custom_call.1} parent=5 // pred_check_branch
        %282 = sbr.rel (%p280) target = $region48
      $region47: #{tpu_custom_call.1} parent=5 // pred_region
        // Predicated region
        $region49: #{tpu_custom_call.1} parent=47 // pred_check
          %p283 = pneg %p40
        $region50: #{tpu_custom_call.1} parent=47 // pred_check_branch
          %285 = sbr.rel (%p283) target = $region52
        $region51: #{tpu_custom_call.1} parent=47 // pred_region
          %s286 = smul.u32 16, %s20
          %p287 = scmp.lt.s32.totalorder %s286, 63
          %s288 = scalar_select %p287, %s286, 63
          %s289 = smul.addr %s288, 8
          %s290 = scalar_lea.vmem %s0, %s289
          %s291 = smul.u32 16, %s20
        $region52: #{tpu_custom_call.1} parent=47 // pred_fallthru
          _
      $region48: #{tpu_custom_call.1} parent=5 // pred_fallthru
        _
      %p292 = scmp.le.s32.totalorder 1, %s20
      %p293 = scmp.lt.s32.totalorder %s20, 5
      %p294 = pnand %p292, %p293
      %p295 = pneg %p294
      // Predicated region
      $region53: #{tpu_custom_call.1} parent=5 // pred_check
        _
      $region54: #{tpu_custom_call.1} parent=5 // pred_check_branch
        %297 = sbr.rel (%p294) target = $region56
      $region55: #{tpu_custom_call.1} parent=5 // pred_region
        %s298 = ssub.s32 %s20, 1
        %s299 = smul.u32 16, %s25
        %p300 = scmp.lt.s32.totalorder %s299, 63
        %s301 = scalar_select %p300, %s299, 63
        %s302 = smul.addr %s301, 8
        %s303 = scalar_lea.vmem %s0, %s302
        %p304 = pneg %p46
        %p305 = pneg %p43
        %p306 = pneg %p67
        %p307 = pneg %p64
        %p308 = pneg %p88
        %p309 = pneg %p85
        %p310 = pneg %p109
        %p311 = pneg %p106
        %p312 = pneg %p130
        %p313 = pneg %p127
        %p314 = pneg %p151
        %p315 = pneg %p148
        %p316 = pneg %p172
        %p317 = pneg %p169
        %p318 = pneg %p193
        %p319 = pneg %p190
        %p320 = pneg %p214
        %p321 = pneg %p211
        %p322 = pneg %p240
        %p323 = pneg %p237
        %s324 = sand.u32 %s227, 1
        %s325 = scalar_lea.sflag [#allocation4], %s324
        %s326 = sand.u32 %s227, 1
        %s327 = smul.addr %s326, 128
        %s328 = scalar_lea.vmem [#allocation3], %s327
        %s329 = smul.u32 16, %s25
        %p330 = scmp.lt.s32.totalorder %s329, 63
        %s331 = scalar_select %p330, %s329, 63
        %s332 = smul.addr %s331, 8
        %s333 = scalar_lea.vmem %s0, %s332
        %s334 = smul.u32 16, %s25
        %s335 = smul.u32 16, %s25
        %v337 = vld [vmem:[%s333] sm:$0xff]
        %v338 = vld [vmem:[%s333 + $0x8] sm:$0xff]
        %v339 = vld [vmem:[%s333 + $0x10] sm:$0xff]
        %v340 = vld [vmem:[%s333 + $0x18] sm:$0xff]
        %v341 = vld [vmem:[%s333 + $0x20] sm:$0xff]
        %v342 = vld [vmem:[%s333 + $0x28] sm:$0xff]
        %v343 = vld [vmem:[%s333 + $0x30] sm:$0xff]
        %v344 = vld [vmem:[%s333 + $0x38] sm:$0xff]
        %v345 = vld [vmem:[%s333 + $0x40] sm:$0xff]
        %v346 = vld [vmem:[%s333 + $0x48] sm:$0xff]
        %v347 = vld [vmem:[%s333 + $0x50] sm:$0xff]
        %v348 = vld [vmem:[%s333 + $0x58] sm:$0xff]
        %v349 = vld [vmem:[%s333 + $0x60] sm:$0xff]
        %v350 = vld [vmem:[%s333 + $0x68] sm:$0xff]
        %v351 = vld [vmem:[%s333 + $0x70] sm:$0xff]
        %v352 = vld [vmem:[%s333 + $0x78] sm:$0xff]
        %v353 = vpack.c.bf16 %v338, %v337
        %v354 = vpack.c.bf16 %v340, %v339
        %v355 = vpack.c.bf16 %v342, %v341
        %v356 = vpack.c.bf16 %v344, %v343
        %v357 = vpack.c.bf16 %v346, %v345
        %v358 = vpack.c.bf16 %v348, %v347
        %v359 = vpack.c.bf16 %v350, %v349
        %v360 = vpack.c.bf16 %v352, %v351
        %v361 = vld [vmem:[%s1] sm:$0xf]
        %v362 = vld [vmem:[%s1 + $0x4] sm:$0xf]
        %v363 = vld [vmem:[%s1 + $0x8] sm:$0xf]
        %v364 = vld [vmem:[%s1 + $0xc] sm:$0xf]
        %v365 = vld [vmem:[%s2] sm:$0x1]
        %v367 = vperm.slane %v365, 0
        %v373 = vunpack.c.l.b16 %v361
        %v374 = vunpack.c.l.b16 %v362
        %v375 = vunpack.c.l.b16 %v363
        %v376 = vunpack.c.l.b16 %v364
        %v377 = vpack.c.b16 %v374, %v373
        %v378 = vpack.c.b16 %v376, %v375
        %vm381 = vcmask 261120
        %v383 = vsel %vm381, %v353, 0
        %v386 = vsel %vm381, %v354, 0
        %v389 = vsel %vm381, %v355, 0
        %v392 = vsel %vm381, %v356, 0
        %v395 = vsel %vm381, %v357, 0
        %v398 = vsel %vm381, %v358, 0
        %v401 = vsel %vm381, %v359, 0
        %v404 = vsel %vm381, %v360, 0
        %406 = vmatpush.bf16.msra.mxu0 0
        %407 = vmatpush.bf16.msra.mxu0 0
        %408 = vmatpush.bf16.msra.mxu0 0
        %409 = vmatpush.bf16.msra.mxu0 0
        %410 = vmatpush.bf16.msra.mxu0 0
        %411 = vmatpush.bf16.msra.mxu0 0
        %412 = vmatpush.bf16.msra.mxu0 %v378
        %413 = vmatpush.bf16.msra.mxu0 %v377
        %414 = vmatmul.bf16.gmra.mxu0 %v383
        %v415 = vpop.f32.mrf.mxu0
        %v416 = vadd.f32 %v367, %v415
        %v417 = vpop.f32.mrf.mxu0
        %v418 = vadd.f32 %v367, %v417
        %419 = vmatmul.bf16.gmra.mxu0 %v386
        %v420 = vpop.f32.mrf.mxu0
        %v421 = vadd.f32 %v367, %v420
        %v422 = vpop.f32.mrf.mxu0
        %v423 = vadd.f32 %v367, %v422
        %424 = vmatmul.bf16.gmra.mxu0 %v389
        %v425 = vpop.f32.mrf.mxu0
        %v426 = vadd.f32 %v367, %v425
        %v427 = vpop.f32.mrf.mxu0
        %v428 = vadd.f32 %v367, %v427
        %429 = vmatmul.bf16.gmra.mxu0 %v392
        %v430 = vpop.f32.mrf.mxu0
        %v431 = vadd.f32 %v367, %v430
        %v432 = vpop.f32.mrf.mxu0
        %v433 = vadd.f32 %v367, %v432
        %434 = vmatmul.bf16.gmra.mxu0 %v395
        %v435 = vpop.f32.mrf.mxu0
        %v436 = vadd.f32 %v367, %v435
        %v437 = vpop.f32.mrf.mxu0
        %v438 = vadd.f32 %v367, %v437
        %439 = vmatmul.bf16.gmra.mxu0 %v398
        %v440 = vpop.f32.mrf.mxu0
        %v441 = vadd.f32 %v367, %v440
        %v442 = vpop.f32.mrf.mxu0
        %v443 = vadd.f32 %v367, %v442
        %444 = vmatmul.bf16.gmra.mxu0 %v401
        %v445 = vpop.f32.mrf.mxu0
        %v446 = vadd.f32 %v367, %v445
        %v447 = vpop.f32.mrf.mxu0
        %v448 = vadd.f32 %v367, %v447
        %449 = vmatmul.bf16.gmra.mxu0 %v404
        %v450 = vpop.f32.mrf.mxu0
        %v451 = vadd.f32 %v367, %v450
        %v452 = vpop.f32.mrf.mxu0
        %v453 = vadd.f32 %v367, %v452
        %454 = vdwg.mxu0
        %v455 = vtanh.pop %v416
        %v456 = vtanh.pop %v418
        %v457 = vtanh.pop %v421
        %v458 = vtanh.pop %v423
        %v459 = vtanh.pop %v426
        %v460 = vtanh.pop %v428
        %v461 = vtanh.pop %v431
        %v462 = vtanh.pop %v433
        %v463 = vtanh.pop %v436
        %v464 = vtanh.pop %v438
        %v465 = vtanh.pop %v441
        %v466 = vtanh.pop %v443
        %v467 = vtanh.pop %v446
        %v468 = vtanh.pop %v448
        %v469 = vtanh.pop %v451
        %v470 = vtanh.pop %v453
        %v471 = vpack.c.bf16 %v456, %v455
        %v472 = vpack.c.bf16 %v458, %v457
        %v473 = vpack.c.bf16 %v460, %v459
        %v474 = vpack.c.bf16 %v462, %v461
        %v475 = vpack.c.bf16 %v464, %v463
        %v476 = vpack.c.bf16 %v466, %v465
        %v477 = vpack.c.bf16 %v468, %v467
        %v478 = vpack.c.bf16 %v470, %v469
        %v479 = vld [vmem:[%s3] sm:$0xf]
        %v480 = vld [vmem:[%s3 + $0x4] sm:$0xf]
        %v481 = vld [vmem:[%s3 + $0x8] sm:$0xf]
        %v482 = vld [vmem:[%s3 + $0xc] sm:$0xf]
        %v483 = vld [vmem:[%s3 + $0x10] sm:$0xf]
        %v484 = vld [vmem:[%s3 + $0x14] sm:$0xf]
        %v485 = vld [vmem:[%s3 + $0x18] sm:$0xf]
        %v486 = vld [vmem:[%s3 + $0x1c] sm:$0xf]
        %v487 = vld [vmem:[%s3 + $0x20] sm:$0xf]
        %v488 = vld [vmem:[%s3 + $0x24] sm:$0xf]
        %v489 = vld [vmem:[%s3 + $0x28] sm:$0xf]
        %v490 = vld [vmem:[%s3 + $0x2c] sm:$0xf]
        %v491 = vld [vmem:[%s3 + $0x30] sm:$0xf]
        %v492 = vld [vmem:[%s3 + $0x34] sm:$0xf]
        %v493 = vld [vmem:[%s3 + $0x38] sm:$0xf]
        %v494 = vld [vmem:[%s3 + $0x3c] sm:$0xf]
        %v495 = vld [vmem:[%s4] sm:$0x1]
        %v497 = vperm.slane %v495, 0
        %v515 = vunpack.c.l.b16 %v479
        %v516 = vunpack.c.l.b16 %v480
        %v517 = vunpack.c.l.b16 %v481
        %v518 = vunpack.c.l.b16 %v482
        %v519 = vunpack.c.l.b16 %v483
        %v520 = vunpack.c.l.b16 %v484
        %v521 = vunpack.c.l.b16 %v485
        %v522 = vunpack.c.l.b16 %v486
        %v523 = vunpack.c.l.b16 %v487
        %v524 = vunpack.c.l.b16 %v488
        %v525 = vunpack.c.l.b16 %v489
        %v526 = vunpack.c.l.b16 %v490
        %v527 = vunpack.c.l.b16 %v491
        %v528 = vunpack.c.l.b16 %v492
        %v529 = vunpack.c.l.b16 %v493
        %v530 = vunpack.c.l.b16 %v494
        %v531 = vpack.c.b16 %v516, %v515
        %v532 = vpack.c.b16 %v518, %v517
        %v533 = vpack.c.b16 %v520, %v519
        %v534 = vpack.c.b16 %v522, %v521
        %v535 = vpack.c.b16 %v524, %v523
        %v536 = vpack.c.b16 %v526, %v525
        %v537 = vpack.c.b16 %v528, %v527
        %v538 = vpack.c.b16 %v530, %v529
        %547 = vmatpush.bf16.msra.mxu0 %v538
        %548 = vmatpush.bf16.msra.mxu0 %v537
        %549 = vmatpush.bf16.msra.mxu0 %v536
        %550 = vmatpush.bf16.msra.mxu0 %v535
        %551 = vmatpush.bf16.msra.mxu0 %v534
        %552 = vmatpush.bf16.msra.mxu0 %v533
        %553 = vmatpush.bf16.msra.mxu0 %v532
        %554 = vmatpush.bf16.msra.mxu0 %v531
        %555 = vmatmul.bf16.gmra.mxu0 %v471
        %v556 = vpop.f32.mrf.mxu0
        %v557 = vadd.f32 %v497, %v556
        %v558 = vpop.f32.mrf.mxu0
        %v559 = vadd.f32 %v497, %v558
        %560 = vmatmul.bf16.gmra.mxu0 %v472
        %v561 = vpop.f32.mrf.mxu0
        %v562 = vadd.f32 %v497, %v561
        %v563 = vpop.f32.mrf.mxu0
        %v564 = vadd.f32 %v497, %v563
        %565 = vmatmul.bf16.gmra.mxu0 %v473
        %v566 = vpop.f32.mrf.mxu0
        %v567 = vadd.f32 %v497, %v566
        %v568 = vpop.f32.mrf.mxu0
        %v569 = vadd.f32 %v497, %v568
        %570 = vmatmul.bf16.gmra.mxu0 %v474
        %v571 = vpop.f32.mrf.mxu0
        %v572 = vadd.f32 %v497, %v571
        %v573 = vpop.f32.mrf.mxu0
        %v574 = vadd.f32 %v497, %v573
        %575 = vmatmul.bf16.gmra.mxu0 %v475
        %v576 = vpop.f32.mrf.mxu0
        %v577 = vadd.f32 %v497, %v576
        %v578 = vpop.f32.mrf.mxu0
        %v579 = vadd.f32 %v497, %v578
        %580 = vmatmul.bf16.gmra.mxu0 %v476
        %v581 = vpop.f32.mrf.mxu0
        %v582 = vadd.f32 %v497, %v581
        %v583 = vpop.f32.mrf.mxu0
        %v584 = vadd.f32 %v497, %v583
        %585 = vmatmul.bf16.gmra.mxu0 %v477
        %v586 = vpop.f32.mrf.mxu0
        %v587 = vadd.f32 %v497, %v586
        %v588 = vpop.f32.mrf.mxu0
        %v589 = vadd.f32 %v497, %v588
        %590 = vmatmul.bf16.gmra.mxu0 %v478
        %v591 = vpop.f32.mrf.mxu0
        %v592 = vadd.f32 %v497, %v591
        %v593 = vpop.f32.mrf.mxu0
        %v594 = vadd.f32 %v497, %v593
        %595 = vdwg.mxu0
        %v596 = vtanh.pop %v557
        %v597 = vtanh.pop %v559
        %v598 = vtanh.pop %v562
        %v599 = vtanh.pop %v564
        %v600 = vtanh.pop %v567
        %v601 = vtanh.pop %v569
        %v602 = vtanh.pop %v572
        %v603 = vtanh.pop %v574
        %v604 = vtanh.pop %v577
        %v605 = vtanh.pop %v579
        %v606 = vtanh.pop %v582
        %v607 = vtanh.pop %v584
        %v608 = vtanh.pop %v587
        %v609 = vtanh.pop %v589
        %v610 = vtanh.pop %v592
        %v611 = vtanh.pop %v594
        %v612 = vpack.c.bf16 %v597, %v596
        %v613 = vpack.c.bf16 %v599, %v598
        %v614 = vpack.c.bf16 %v601, %v600
        %v615 = vpack.c.bf16 %v603, %v602
        %v616 = vpack.c.bf16 %v605, %v604
        %v617 = vpack.c.bf16 %v607, %v606
        %v618 = vpack.c.bf16 %v609, %v608
        %v619 = vpack.c.bf16 %v611, %v610
        %v620 = vld [vmem:[%s5] sm:$0xf]
        %v621 = vld [vmem:[%s5 + $0x4] sm:$0xf]
        %v622 = vld [vmem:[%s5 + $0x8] sm:$0xf]
        %v623 = vld [vmem:[%s5 + $0xc] sm:$0xf]
        %v624 = vld [vmem:[%s5 + $0x10] sm:$0xf]
        %v625 = vld [vmem:[%s5 + $0x14] sm:$0xf]
        %v626 = vld [vmem:[%s5 + $0x18] sm:$0xf]
        %v627 = vld [vmem:[%s5 + $0x1c] sm:$0xf]
        %v628 = vld [vmem:[%s5 + $0x20] sm:$0xf]
        %v629 = vld [vmem:[%s5 + $0x24] sm:$0xf]
        %v630 = vld [vmem:[%s5 + $0x28] sm:$0xf]
        %v631 = vld [vmem:[%s5 + $0x2c] sm:$0xf]
        %v632 = vld [vmem:[%s5 + $0x30] sm:$0xf]
        %v633 = vld [vmem:[%s5 + $0x34] sm:$0xf]
        %v634 = vld [vmem:[%s5 + $0x38] sm:$0xf]
        %v635 = vld [vmem:[%s5 + $0x3c] sm:$0xf]
        %v636 = vld [vmem:[%s6] sm:$0x1]
        %v638 = vperm.slane %v636, 0
        %v656 = vunpack.c.l.b16 %v620
        %v657 = vunpack.c.l.b16 %v621
        %v658 = vunpack.c.l.b16 %v622
        %v659 = vunpack.c.l.b16 %v623
        %v660 = vunpack.c.l.b16 %v624
        %v661 = vunpack.c.l.b16 %v625
        %v662 = vunpack.c.l.b16 %v626
        %v663 = vunpack.c.l.b16 %v627
        %v664 = vunpack.c.l.b16 %v628
        %v665 = vunpack.c.l.b16 %v629
        %v666 = vunpack.c.l.b16 %v630
        %v667 = vunpack.c.l.b16 %v631
        %v668 = vunpack.c.l.b16 %v632
        %v669 = vunpack.c.l.b16 %v633
        %v670 = vunpack.c.l.b16 %v634
        %v671 = vunpack.c.l.b16 %v635
        %v672 = vpack.c.b16 %v657, %v656
        %v673 = vpack.c.b16 %v659, %v658
        %v674 = vpack.c.b16 %v661, %v660
        %v675 = vpack.c.b16 %v663, %v662
        %v676 = vpack.c.b16 %v665, %v664
        %v677 = vpack.c.b16 %v667, %v666
        %v678 = vpack.c.b16 %v669, %v668
        %v679 = vpack.c.b16 %v671, %v670
        %688 = vmatpush.bf16.msra.mxu0 %v679
        %689 = vmatpush.bf16.msra.mxu0 %v678
        %690 = vmatpush.bf16.msra.mxu0 %v677
        %691 = vmatpush.bf16.msra.mxu0 %v676
        %692 = vmatpush.bf16.msra.mxu0 %v675
        %693 = vmatpush.bf16.msra.mxu0 %v674
        %694 = vmatpush.bf16.msra.mxu0 %v673
        %695 = vmatpush.bf16.msra.mxu0 %v672
        %696 = vmatmul.bf16.gmra.mxu0 %v612
        %v697 = vpop.f32.mrf.mxu0
        %v698 = vadd.f32 %v638, %v697
        %v699 = vpop.f32.mrf.mxu0
        %v700 = vadd.f32 %v638, %v699
        %701 = vmatmul.bf16.gmra.mxu0 %v613
        %v702 = vpop.f32.mrf.mxu0
        %v703 = vadd.f32 %v638, %v702
        %v704 = vpop.f32.mrf.mxu0
        %v705 = vadd.f32 %v638, %v704
        %706 = vmatmul.bf16.gmra.mxu0 %v614
        %v707 = vpop.f32.mrf.mxu0
        %v708 = vadd.f32 %v638, %v707
        %v709 = vpop.f32.mrf.mxu0
        %v710 = vadd.f32 %v638, %v709
        %711 = vmatmul.bf16.gmra.mxu0 %v615
        %v712 = vpop.f32.mrf.mxu0
        %v713 = vadd.f32 %v638, %v712
        %v714 = vpop.f32.mrf.mxu0
        %v715 = vadd.f32 %v638, %v714
        %716 = vmatmul.bf16.gmra.mxu0 %v616
        %v717 = vpop.f32.mrf.mxu0
        %v718 = vadd.f32 %v638, %v717
        %v719 = vpop.f32.mrf.mxu0
        %v720 = vadd.f32 %v638, %v719
        %721 = vmatmul.bf16.gmra.mxu0 %v617
        %v722 = vpop.f32.mrf.mxu0
        %v723 = vadd.f32 %v638, %v722
        %v724 = vpop.f32.mrf.mxu0
        %v725 = vadd.f32 %v638, %v724
        %726 = vmatmul.bf16.gmra.mxu0 %v618
        %v727 = vpop.f32.mrf.mxu0
        %v728 = vadd.f32 %v638, %v727
        %v729 = vpop.f32.mrf.mxu0
        %v730 = vadd.f32 %v638, %v729
        %731 = vmatmul.bf16.gmra.mxu0 %v619
        %v732 = vpop.f32.mrf.mxu0
        %v733 = vadd.f32 %v638, %v732
        %v734 = vpop.f32.mrf.mxu0
        %v735 = vadd.f32 %v638, %v734
        %736 = vdwg.mxu0
        %v737 = vld [vmem:[%s7] sm:$0x1]
        %v739 = vperm.slane %v737, 0
        %v741 = vmul.f32 %v596, %v739
        %v742 = vmul.f32 %v597, %v739
        %v743 = vmul.f32 %v598, %v739
        %v744 = vmul.f32 %v599, %v739
        %v745 = vmul.f32 %v600, %v739
        %v746 = vmul.f32 %v601, %v739
        %v747 = vmul.f32 %v602, %v739
        %v748 = vmul.f32 %v603, %v739
        %v749 = vmul.f32 %v604, %v739
        %v750 = vmul.f32 %v605, %v739
        %v751 = vmul.f32 %v606, %v739
        %v752 = vmul.f32 %v607, %v739
        %v753 = vmul.f32 %v608, %v739
        %v754 = vmul.f32 %v609, %v739
        %v755 = vmul.f32 %v610, %v739
        %v756 = vmul.f32 %v611, %v739
        %757 = vadd.xlane.f32.xlu0 %v741
        %v758 = vpop.xlane.xlu0 %757
        %759 = vadd.xlane.f32.xlu0 %v742
        %v760 = vpop.xlane.xlu0 %759
        %761 = vadd.xlane.f32.xlu0 %v743
        %v762 = vpop.xlane.xlu0 %761
        %763 = vadd.xlane.f32.xlu0 %v744
        %v764 = vpop.xlane.xlu0 %763
        %765 = vadd.xlane.f32.xlu0 %v745
        %v766 = vpop.xlane.xlu0 %765
        %767 = vadd.xlane.f32.xlu0 %v746
        %v768 = vpop.xlane.xlu0 %767
        %769 = vadd.xlane.f32.xlu0 %v747
        %v770 = vpop.xlane.xlu0 %769
        %771 = vadd.xlane.f32.xlu0 %v748
        %v772 = vpop.xlane.xlu0 %771
        %773 = vadd.xlane.f32.xlu0 %v749
        %v774 = vpop.xlane.xlu0 %773
        %775 = vadd.xlane.f32.xlu0 %v750
        %v776 = vpop.xlane.xlu0 %775
        %777 = vadd.xlane.f32.xlu0 %v751
        %v778 = vpop.xlane.xlu0 %777
        %779 = vadd.xlane.f32.xlu0 %v752
        %v780 = vpop.xlane.xlu0 %779
        %781 = vadd.xlane.f32.xlu0 %v753
        %v782 = vpop.xlane.xlu0 %781
        %783 = vadd.xlane.f32.xlu0 %v754
        %v784 = vpop.xlane.xlu0 %783
        %785 = vadd.xlane.f32.xlu0 %v755
        %v786 = vpop.xlane.xlu0 %785
        %787 = vadd.xlane.f32.xlu0 %v756
        %v788 = vpop.xlane.xlu0 %787
        %v789 = vld [vmem:[#allocation2] sm:$0x1]
        %v791 = vperm.slane %v789, 0
        %v793 = vadd.f32 %v758, %v791
        %v794 = vadd.f32 %v760, %v791
        %v795 = vadd.f32 %v762, %v791
        %v796 = vadd.f32 %v764, %v791
        %v797 = vadd.f32 %v766, %v791
        %v798 = vadd.f32 %v768, %v791
        %v799 = vadd.f32 %v770, %v791
        %v800 = vadd.f32 %v772, %v791
        %v801 = vadd.f32 %v774, %v791
        %v802 = vadd.f32 %v776, %v791
        %v803 = vadd.f32 %v778, %v791
        %v804 = vadd.f32 %v780, %v791
        %v805 = vadd.f32 %v782, %v791
        %v806 = vadd.f32 %v784, %v791
        %v807 = vadd.f32 %v786, %v791
        %v808 = vadd.f32 %v788, %v791
        %v809 = vand.u32 2147483647, %v698
        %v810 = vand.u32 2147483647, %v700
        %v811 = vand.u32 2147483647, %v703
        %v812 = vand.u32 2147483647, %v705
        %v813 = vand.u32 2147483647, %v708
        %v814 = vand.u32 2147483647, %v710
        %v815 = vand.u32 2147483647, %v713
        %v816 = vand.u32 2147483647, %v715
        %v817 = vand.u32 2147483647, %v718
        %v818 = vand.u32 2147483647, %v720
        %v819 = vand.u32 2147483647, %v723
        %v820 = vand.u32 2147483647, %v725
        %v821 = vand.u32 2147483647, %v728
        %v822 = vand.u32 2147483647, %v730
        %v823 = vand.u32 2147483647, %v733
        %v824 = vand.u32 2147483647, %v735
        %825 = vadd.xlane.f32.xlu0 %v809
        %v826 = vpop.xlane.xlu0 %825
        %827 = vadd.xlane.f32.xlu0 %v810
        %v828 = vpop.xlane.xlu0 %827
        %829 = vadd.xlane.f32.xlu0 %v811
        %v830 = vpop.xlane.xlu0 %829
        %831 = vadd.xlane.f32.xlu0 %v812
        %v832 = vpop.xlane.xlu0 %831
        %833 = vadd.xlane.f32.xlu0 %v813
        %v834 = vpop.xlane.xlu0 %833
        %835 = vadd.xlane.f32.xlu0 %v814
        %v836 = vpop.xlane.xlu0 %835
        %837 = vadd.xlane.f32.xlu0 %v815
        %v838 = vpop.xlane.xlu0 %837
        %839 = vadd.xlane.f32.xlu0 %v816
        %v840 = vpop.xlane.xlu0 %839
        %841 = vadd.xlane.f32.xlu0 %v817
        %v842 = vpop.xlane.xlu0 %841
        %843 = vadd.xlane.f32.xlu0 %v818
        %v844 = vpop.xlane.xlu0 %843
        %845 = vadd.xlane.f32.xlu0 %v819
        %v846 = vpop.xlane.xlu0 %845
        %847 = vadd.xlane.f32.xlu0 %v820
        %v848 = vpop.xlane.xlu0 %847
        %849 = vadd.xlane.f32.xlu0 %v821
        %v850 = vpop.xlane.xlu0 %849
        %851 = vadd.xlane.f32.xlu0 %v822
        %v852 = vpop.xlane.xlu0 %851
        %853 = vadd.xlane.f32.xlu0 %v823
        %v854 = vpop.xlane.xlu0 %853
        %855 = vadd.xlane.f32.xlu0 %v824
        %v856 = vpop.xlane.xlu0 %855
        %v857 = vmul.f32 %v793, 1.442695
        %v858 = vpow.pop %v857
        %v859 = vmul.f32 %v794, 1.442695
        %v860 = vpow.pop %v859
        %v861 = vmul.f32 %v795, 1.442695
        %v862 = vpow.pop %v861
        %v863 = vmul.f32 %v796, 1.442695
        %v864 = vpow.pop %v863
        %v865 = vmul.f32 %v797, 1.442695
        %v866 = vpow.pop %v865
        %v867 = vmul.f32 %v798, 1.442695
        %v868 = vpow.pop %v867
        %v869 = vmul.f32 %v799, 1.442695
        %v870 = vpow.pop %v869
        %v871 = vmul.f32 %v800, 1.442695
        %v872 = vpow.pop %v871
        %v873 = vmul.f32 %v801, 1.442695
        %v874 = vpow.pop %v873
        %v875 = vmul.f32 %v802, 1.442695
        %v876 = vpow.pop %v875
        %v877 = vmul.f32 %v803, 1.442695
        %v878 = vpow.pop %v877
        %v879 = vmul.f32 %v804, 1.442695
        %v880 = vpow.pop %v879
        %v881 = vmul.f32 %v805, 1.442695
        %v882 = vpow.pop %v881
        %v883 = vmul.f32 %v806, 1.442695
        %v884 = vpow.pop %v883
        %v885 = vmul.f32 %v807, 1.442695
        %v886 = vpow.pop %v885
        %v887 = vmul.f32 %v808, 1.442695
        %v888 = vpow.pop %v887
        %v889 = vrcp.pop %v826
        %v890 = vrcp.pop %v828
        %v891 = vrcp.pop %v830
        %v892 = vrcp.pop %v832
        %v893 = vrcp.pop %v834
        %v894 = vrcp.pop %v836
        %v895 = vrcp.pop %v838
        %v896 = vrcp.pop %v840
        %v897 = vrcp.pop %v842
        %v898 = vrcp.pop %v844
        %v899 = vrcp.pop %v846
        %v900 = vrcp.pop %v848
        %v901 = vrcp.pop %v850
        %v902 = vrcp.pop %v852
        %v903 = vrcp.pop %v854
        %v904 = vrcp.pop %v856
        %v905 = vmul.f32 %v858, %v889
        %v906 = vmul.f32 %v860, %v890
        %v907 = vmul.f32 %v862, %v891
        %v908 = vmul.f32 %v864, %v892
        %v909 = vmul.f32 %v866, %v893
        %v910 = vmul.f32 %v868, %v894
        %v911 = vmul.f32 %v870, %v895
        %v912 = vmul.f32 %v872, %v896
        %v913 = vmul.f32 %v874, %v897
        %v914 = vmul.f32 %v876, %v898
        %v915 = vmul.f32 %v878, %v899
        %v916 = vmul.f32 %v880, %v900
        %v917 = vmul.f32 %v882, %v901
        %v918 = vmul.f32 %v884, %v902
        %v919 = vmul.f32 %v886, %v903
        %v920 = vmul.f32 %v888, %v904
        %922 = vset.pattern.permute.xlu0 0
        %923 = vperm.xlu0 %922, %v905
        %v924 = vpop.permute.xlu0 %923
        %927 = vset.pattern.permute.xlu0 0
        %928 = vperm.xlu0 %927, %v906
        %v929 = vpop.permute.xlu0 %928
        %932 = vset.pattern.permute.xlu0 0
        %933 = vperm.xlu0 %932, %v907
        %v934 = vpop.permute.xlu0 %933
        %937 = vset.pattern.permute.xlu0 0
        %938 = vperm.xlu0 %937, %v908
        %v939 = vpop.permute.xlu0 %938
        %942 = vset.pattern.permute.xlu0 0
        %943 = vperm.xlu0 %942, %v909
        %v944 = vpop.permute.xlu0 %943
        %947 = vset.pattern.permute.xlu0 0
        %948 = vperm.xlu0 %947, %v910
        %v949 = vpop.permute.xlu0 %948
        %952 = vset.pattern.permute.xlu0 0
        %953 = vperm.xlu0 %952, %v911
        %v954 = vpop.permute.xlu0 %953
        %957 = vset.pattern.permute.xlu0 0
        %958 = vperm.xlu0 %957, %v912
        %v959 = vpop.permute.xlu0 %958
        %962 = vset.pattern.permute.xlu0 0
        %963 = vperm.xlu0 %962, %v913
        %v964 = vpop.permute.xlu0 %963
        %967 = vset.pattern.permute.xlu0 0
        %968 = vperm.xlu0 %967, %v914
        %v969 = vpop.permute.xlu0 %968
        %972 = vset.pattern.permute.xlu0 0
        %973 = vperm.xlu0 %972, %v915
        %v974 = vpop.permute.xlu0 %973
        %977 = vset.pattern.permute.xlu0 0
        %978 = vperm.xlu0 %977, %v916
        %v979 = vpop.permute.xlu0 %978
        %982 = vset.pattern.permute.xlu0 0
        %983 = vperm.xlu0 %982, %v917
        %v984 = vpop.permute.xlu0 %983
        %987 = vset.pattern.permute.xlu0 0
        %988 = vperm.xlu0 %987, %v918
        %v989 = vpop.permute.xlu0 %988
        %992 = vset.pattern.permute.xlu0 0
        %993 = vperm.xlu0 %992, %v919
        %v994 = vpop.permute.xlu0 %993
        %997 = vset.pattern.permute.xlu0 0
        %998 = vperm.xlu0 %997, %v920
        %v999 = vpop.permute.xlu0 %998
        %v1001 = vmul.f32 %v698, %v924
        %v1002 = vmul.f32 %v700, %v929
        %v1003 = vmul.f32 %v703, %v934
        %v1004 = vmul.f32 %v705, %v939
        %v1005 = vmul.f32 %v708, %v944
        %v1006 = vmul.f32 %v710, %v949
        %v1007 = vmul.f32 %v713, %v954
        %v1008 = vmul.f32 %v715, %v959
        %v1009 = vmul.f32 %v718, %v964
        %v1010 = vmul.f32 %v720, %v969
        %v1011 = vmul.f32 %v723, %v974
        %v1012 = vmul.f32 %v725, %v979
        %v1013 = vmul.f32 %v728, %v984
        %v1014 = vmul.f32 %v730, %v989
        %v1015 = vmul.f32 %v733, %v994
        %v1016 = vmul.f32 %v735, %v999
        %1017 = vst [vmem:[%s328] sm:$0xff] %v1001
        %1018 = vst [vmem:[%s328 + $0x8] sm:$0xff] %v1002
        %1019 = vst [vmem:[%s328 + $0x10] sm:$0xff] %v1003
        %1020 = vst [vmem:[%s328 + $0x18] sm:$0xff] %v1004
        %1021 = vst [vmem:[%s328 + $0x20] sm:$0xff] %v1005
        %1022 = vst [vmem:[%s328 + $0x28] sm:$0xff] %v1006
        %1023 = vst [vmem:[%s328 + $0x30] sm:$0xff] %v1007
        %1024 = vst [vmem:[%s328 + $0x38] sm:$0xff] %v1008
        %1025 = vst [vmem:[%s328 + $0x40] sm:$0xff] %v1009
        %1026 = vst [vmem:[%s328 + $0x48] sm:$0xff] %v1010
        %1027 = vst [vmem:[%s328 + $0x50] sm:$0xff] %v1011
        %1028 = vst [vmem:[%s328 + $0x58] sm:$0xff] %v1012
        %1029 = vst [vmem:[%s328 + $0x60] sm:$0xff] %v1013
        %1030 = vst [vmem:[%s328 + $0x68] sm:$0xff] %v1014
        %1031 = vst [vmem:[%s328 + $0x70] sm:$0xff] %v1015
        %1032 = vst [vmem:[%s328 + $0x78] sm:$0xff] %v1016
        %s1033 = sand.u32 %s227, 1
        %s1034 = scalar_lea.sflag [#allocation4], %s1033
        %s1035 = sand.u32 %s227, 1
        %s1036 = smul.addr %s1035, 128
        %s1037 = scalar_lea.vmem [#allocation3], %s1036
        // Predicated region
        $region57: #{tpu_custom_call.1} parent=55 // pred_check
          %p1038 = pneg %p237
        $region58: #{tpu_custom_call.1} parent=55 // pred_check_branch
          %1040 = sbr.rel (%p1038) target = $region60
        $region59: #{tpu_custom_call.1} parent=55 // pred_region
          %s1041 = smul.u32 16, %s25
          %1043 = vsyncadd %s1034, 0
          %s1044 = smul.addr %s1041, 8
          %s1045 = scalar_lea.hbm %s9, %s1044
          %s1046 = sshll.u32 %s1037, 4
          %s1047 = int_to_ptr.vmem [resolvable:$true] %s1046
          %s1048 = sshll.u32 %s1045, 4
          %s1049 = int_to_ptr.hbm [resolvable:$true] %s1048
          %1054 = dma.vmem_to_hbm [thread:$0]  %s1047, 2048, %s1049, %s1034, 128, 128, 8
        $region60: #{tpu_custom_call.1} parent=55 // pred_fallthru
          _
      $region56: #{tpu_custom_call.1} parent=5 // pred_fallthru
        _
      %p1055 = scmp.le.s32.totalorder 2, %s20
      // Predicated region
      $region61: #{tpu_custom_call.1} parent=5 // pred_check
        %p1056 = pneg %p1055
      $region62: #{tpu_custom_call.1} parent=5 // pred_check_branch
        %1058 = sbr.rel (%p1056) target = $region64
      $region63: #{tpu_custom_call.1} parent=5 // pred_region
        %s1059 = ssub.s32 %s20, 2
        // Predicated region
        $region65: #{tpu_custom_call.1} parent=63 // pred_check
          %p1060 = pneg %p243
        $region66: #{tpu_custom_call.1} parent=63 // pred_check_branch
          %1062 = sbr.rel (%p1060) target = $region68
        $region67: #{tpu_custom_call.1} parent=63 // pred_region
          %s1063 = sand.u32 %s228, 1
          %s1064 = scalar_lea.sflag [#allocation4], %s1063
          %s1065 = sand.u32 %s228, 1
          %s1066 = smul.addr %s1065, 128
          %s1067 = scalar_lea.vmem [#allocation3], %s1066
          %1069 = dma.done %s1064, 2048
        $region68: #{tpu_custom_call.1} parent=63 // pred_fallthru
          _
      $region64: #{tpu_custom_call.1} parent=5 // pred_fallthru
        _
    $region6: #{tpu_custom_call.1} parent=1 // loop_footer
      %s24 = sadd.s32 1, %s20
    $region7: #{tpu_custom_call.1} parent=1 // loop_footer_branch
      %19 = sbr.rel target = $region3
    $region8: #{tpu_custom_call.1} parent=1 // loop_exit
      _
    %1070 = vsyncpa [#allocation4], 1
    %s1071 = scalar_lea.sflag [#allocation4], 1
    %1072 = vsyncpa %s1071, 1

</llo_original>
